<compile_context>
chip_gen: v5e
topology: v5e:2x2
jax: 0.10.0
libtpu: 0.0.40
codegen_flags: <defaults>
</compile_context>

<pallas_src>
import functools

import jax
import jax.numpy as jnp
from jax import lax
from jax.experimental import pallas as pl
from jax.experimental.pallas import tpu as pltpu


def _round_up(x, m):
    return (x + m - 1) // m * m


def _mlp_kernel(x_ref, w1_ref, b1_ref, w2_ref, b2_ref, out_ref):
    # x_ref:  (TM, D) native dtype   w1_ref: (H, D) bf16 (torch layout)
    # b1_ref: (1, H)  f32            w2_ref: (O, H) f32  (torch layout)
    # b2_ref: (O, 1)  f32            out_ref:(O, TM) f32 (transposed, lane-dense)

    # Cast x to bf16 in-kernel (VPU convert rides idle slots under the
    # MXU-bound fc1); halves MXU passes vs f32 x without an HBM round trip.
    x_bf16 = x_ref[...].astype(jnp.bfloat16)

    h = lax.dot_general(
        x_bf16, w1_ref[...],
        dimension_numbers=(((1,), (1,)), ((), ())),   # x @ w1^T
        preferred_element_type=jnp.float32,
    )                                                 # (TM, H), f32 accumulate
    h = jnp.maximum(h + b1_ref[...], 0.0)             # bias + ReLU in f32

    # fc2 with the 2-row LHS so MXU pushes stay minimal and the result lands
    # lane-dense as (O, TM).  (Review: verify via bundle dump that this does
    # not materialize an XLU transpose of h; keep this form either way.)
    y_t = lax.dot_general(
        w2_ref[...], h,
        dimension_numbers=(((1,), (1,)), ((), ())),   # (w2 @ h^T) == (h @ w2^T)^T
        preferred_element_type=jnp.float32,
    )                                                 # (O, TM)
    out_ref[...] = (y_t + b2_ref[...]).astype(out_ref.dtype)


@functools.partial(jax.jit, static_argnames=("tm",))
def mlp_predictor_forward(x, w1, b1, w2, b2, *, tm=16384):
    """x: (B, num_objects, D); torch-layout params -> (B, 1, num_objects, 2)."""
    assert tm % 128 == 0, "row tile must be a multiple of 128 (lane-dense output)"
    B, N, D = x.shape
    H = w1.shape[0]          # fc1.weight is (H, D)
    O = w2.shape[0]          # fc2.weight is (O, H), O = 2
    M = B * N
    out_dtype = jnp.promote_types(x.dtype, w1.dtype)

    # x stays in its native dtype (no wrapper cast, no wrapper pad): the only
    # HBM traffic for x is the kernel's own streamed read.
    x2d = x.reshape(M, D)
    w1_c = w1.astype(jnp.bfloat16)                 # tiny, VMEM-resident
    b1_2d = b1.reshape(1, H).astype(jnp.float32)
    w2_c = w2.astype(jnp.float32)
    b2_2d = b2.reshape(O, 1).astype(jnp.float32)

    # Row tile selection:
    #   * large M   : TM = tm (multiple of 128), grid = cdiv -> partial tail block.
    #   * moderate M: split into >= 4 tiles so the x DMA pipelines behind compute
    #                 and both v7x TensorCores get rows.
    #   * tiny M    : one tile equal to the full row extent (block == full dim).
    MIN_TILES = 4
    MIN_TM = 256
    if M > tm:
        TM = tm
    elif M >= MIN_TILES * MIN_TM:
        TM = max(MIN_TM, _round_up(pl.cdiv(M, MIN_TILES), 128))
    else:
        TM = M
    grid = (pl.cdiv(M, TM),)

    cost = pl.CostEstimate(
        flops=2 * M * (D * H + H * O),
        transcendentals=0,
        bytes_accessed=(
            M * D * x.dtype.itemsize       # x read (native dtype)
            + H * D * 2 + H * 4            # fc1 params
            + O * H * 4 + O * 4            # fc2 params
            + M * O * 4                    # output write
        ),
    )

    out_t = pl.pallas_call(
        _mlp_kernel,
        out_shape=jax.ShapeDtypeStruct((O, M), jnp.float32),
        grid=grid,
        in_specs=[
            pl.BlockSpec((TM, D), lambda i: (i, 0)),   # x: streamed per tile
            pl.BlockSpec((H, D), lambda i: (0, 0)),    # w1: VMEM-resident
            pl.BlockSpec((1, H), lambda i: (0, 0)),    # b1: VMEM-resident
            pl.BlockSpec((O, H), lambda i: (0, 0)),    # w2: VMEM-resident
            pl.BlockSpec((O, 1), lambda i: (0, 0)),    # b2: VMEM-resident
        ],
        out_specs=pl.BlockSpec((O, TM), lambda i: (0, i)),  # lane-dense output
        compiler_params=pltpu.CompilerParams(
            dimension_semantics=("parallel",),
            # TM=16384 f32 tile: ~16 MiB double-buffered x + ~6 MiB temporaries;
            # 48 MiB keeps headroom on v7x's 64 MiB physical VMEM.
            vmem_limit_bytes=48 * 1024 * 1024,
        ),
        cost_estimate=cost,
    )(x2d, w1_c, b1_2d, w2_c, b2_2d)

    # (O, M) -> (M, O) -> (B, time=1, num_objects, O)   [unsqueeze(1)]
    out = out_t.T.astype(out_dtype)
    return out.reshape(B, N, O)[:, None, :, :]


def _reference_forward(x, w1, b1, w2, b2):
    h = jnp.maximum(jnp.einsum("bnd,hd->bnh", x, w1) + b1, 0.0)
    y = jnp.einsum("bnh,oh->bno", h, w2) + b2
    return y[:, None, :, :]


if __name__ == "__main__":
    input_size = 128
    hidden_size = 32
    B, num_objects = 2, 8

    key = jax.random.PRNGKey(0)
    kx, k1, k2, k3, k4 = jax.random.split(key, 5)

    # torch nn.Linear shapes: fc1.weight (H, D), fc1.bias (H,), fc2.weight (2, H), fc2.bias (2,)
    bound1 = 1.0 / (input_size ** 0.5)
    bound2 = 1.0 / (hidden_size ** 0.5)
    w1 = jax.random.uniform(k1, (hidden_size, input_size), jnp.float32, -bound1, bound1)
    b1 = jax.random.uniform(k2, (hidden_size,), jnp.float32, -bound1, bound1)
    w2 = jax.random.uniform(k3, (2, hidden_size), jnp.float32, -bound2, bound2)
    b2 = jax.random.uniform(k4, (2,), jnp.float32, -bound2, bound2)

    x = jax.random.normal(kx, (B, num_objects, input_size), jnp.float32)

    out = mlp_predictor_forward(x, w1, b1, w2, b2)
    out = jax.block_until_ready(out)

    ref = _reference_forward(x, w1, b1, w2, b2)
    assert out.shape == (B, 1, num_objects, 2), out.shape
    # bf16 x/w1 into the MXU -> tolerance loosened vs f32 ref.
    assert jnp.allclose(out, ref, atol=1e-2, rtol=1e-2), float(jnp.max(jnp.abs(out - ref)))

    # Multi-tile + partial last block path (tm=128 -> grid=(2,), tail rows masked).
    B2, N2 = 2, 100            # M = 200, TM = 128, last block partial
    x_big = jax.random.normal(jax.random.PRNGKey(1), (B2, N2, input_size), jnp.float32)
    out_big = jax.block_until_ready(mlp_predictor_forward(x_big, w1, b1, w2, b2, tm=128))
    ref_big = _reference_forward(x_big, w1, b1, w2, b2)
    assert out_big.shape == (B2, 1, N2, 2), out_big.shape
    assert jnp.allclose(out_big, ref_big, atol=1e-2, rtol=1e-2)

    # Moderate-M path with default tm: splits into >= 4 tiles with a partial tail.
    B3, N3 = 3, 400            # M = 1200 -> TM = 384, grid = (4,)
    x_mid = jax.random.normal(jax.random.PRNGKey(2), (B3, N3, input_size), jnp.float32)
    out_mid = jax.block_until_ready(mlp_predictor_forward(x_mid, w1, b1, w2, b2))
    ref_mid = _reference_forward(x_mid, w1, b1, w2, b2)
    assert out_mid.shape == (B3, 1, N3, 2), out_mid.shape
    assert jnp.allclose(out_mid, ref_mid, atol=1e-2, rtol=1e-2)

    print("KERNEL_OK")
</pallas_src>

<mosaic_0001>
module attributes {stable_mosaic.version = 11 : i64} {
  func.func @_mlp_kernel(%arg0: i32, %arg1: memref<16x128xf32, #tpu.memory_space<vmem>>, %arg2: memref<32x128xbf16, #tpu.memory_space<vmem>>, %arg3: memref<1x32xf32, #tpu.memory_space<vmem>>, %arg4: memref<2x32xf32, #tpu.memory_space<vmem>>, %arg5: memref<2x1xf32, #tpu.memory_space<vmem>>, %arg6: memref<2x16xf32, #tpu.memory_space<vmem>>) attributes {dimension_semantics = [#tpu.dimension_semantics<parallel>], iteration_bounds = array<i64: 1>, scalar_prefetch = 0 : i64, scratch_operands = 0 : i64, tpu.core_type = #tpu.core_type<tc>, window_params = [{transform_indices = @transform_0, window_bounds = array<i64: 16, 128>}, {pipeline_mode = #tpu.pipeline_mode<synchronous>, transform_indices = @transform_1, window_bounds = array<i64: 32, 128>}, {pipeline_mode = #tpu.pipeline_mode<synchronous>, transform_indices = @transform_2, window_bounds = array<i64: 1, 32>}, {pipeline_mode = #tpu.pipeline_mode<synchronous>, transform_indices = @transform_3, window_bounds = array<i64: 2, 32>}, {pipeline_mode = #tpu.pipeline_mode<synchronous>, transform_indices = @transform_4, window_bounds = array<i64: 2, 1>}, {transform_indices = @transform_5, window_bounds = array<i64: 2, 16>}]} {
    %c0 = arith.constant 0 : index
    %c0_0 = arith.constant 0 : index
    %0 = vector.load %arg1[%c0, %c0_0] : memref<16x128xf32, #tpu.memory_space<vmem>>, vector<16x128xf32>
    %1 = arith.truncf %0 : vector<16x128xf32> to vector<16x128xbf16>
    %c0_1 = arith.constant 0 : index
    %c0_2 = arith.constant 0 : index
    %2 = vector.load %arg2[%c0_1, %c0_2] : memref<32x128xbf16, #tpu.memory_space<vmem>>, vector<32x128xbf16>
    %cst = arith.constant dense<0.000000e+00> : vector<16x32xf32>
    %3 = tpu.matmul %1, %2, %cst {dimension_numbers = #tpu.dot_dimension_numbers<[1], [1], [0], [0], [0, 0, 1, 0], [], []>} : vector<16x128xbf16>, vector<32x128xbf16>, vector<16x32xf32> -> vector<16x32xf32>
    %c0_3 = arith.constant 0 : index
    %c0_4 = arith.constant 0 : index
    %4 = vector.load %arg3[%c0_3, %c0_4] : memref<1x32xf32, #tpu.memory_space<vmem>>, vector<1x32xf32>
    %5 = vector.broadcast %4 : vector<1x32xf32> to vector<16x32xf32>
    %6 = arith.addf %3, %5 : vector<16x32xf32>
    %cst_5 = arith.constant 0.000000e+00 : f32
    %7 = vector.broadcast %cst_5 : f32 to vector<16x32xf32>
    %8 = arith.maximumf %6, %7 : vector<16x32xf32>
    %c0_6 = arith.constant 0 : index
    %c0_7 = arith.constant 0 : index
    %9 = vector.load %arg4[%c0_6, %c0_7] : memref<2x32xf32, #tpu.memory_space<vmem>>, vector<2x32xf32>
    %cst_8 = arith.constant dense<0.000000e+00> : vector<2x16xf32>
    %10 = tpu.matmul %9, %8, %cst_8 {dimension_numbers = #tpu.dot_dimension_numbers<[1], [1], [0], [0], [0, 0, 1, 0], [], []>} : vector<2x32xf32>, vector<16x32xf32>, vector<2x16xf32> -> vector<2x16xf32>
    %c0_9 = arith.constant 0 : index
    %c0_10 = arith.constant 0 : index
    %11 = vector.load %arg5[%c0_9, %c0_10] : memref<2x1xf32, #tpu.memory_space<vmem>>, vector<2x1xf32>
    %12 = vector.broadcast %11 : vector<2x1xf32> to vector<2x16xf32>
    %13 = arith.addf %10, %12 : vector<2x16xf32>
    %c0_11 = arith.constant 0 : index
    %c0_12 = arith.constant 0 : index
    %14 = vector.load %arg6[%c0_11, %c0_12] : memref<2x16xf32, #tpu.memory_space<vmem>>, vector<2x16xf32>
    tpu.vector_store %arg6[%c0_11, %c0_12], %13 {strides = array<i32>} : memref<2x16xf32, #tpu.memory_space<vmem>>, vector<2x16xf32>,
    return
  }
  func.func @transform_0(%arg0: i32) -> (i32, i32) {
    %c0_i32 = arith.constant 0 : i32
    %c0_i32_0 = arith.constant 0 : i32
    return %arg0, %c0_i32 : i32, i32
  }
  func.func @transform_1(%arg0: i32) -> (i32, i32) {
    %c0_i32 = arith.constant 0 : i32
    %c0_i32_0 = arith.constant 0 : i32
    %c0_i32_1 = arith.constant 0 : i32
    return %c0_i32, %c0_i32_0 : i32, i32
  }
  func.func @transform_2(%arg0: i32) -> (i32, i32) {
    %c0_i32 = arith.constant 0 : i32
    %c0_i32_0 = arith.constant 0 : i32
    %c0_i32_1 = arith.constant 0 : i32
    return %c0_i32, %c0_i32_0 : i32, i32
  }
  func.func @transform_3(%arg0: i32) -> (i32, i32) {
    %c0_i32 = arith.constant 0 : i32
    %c0_i32_0 = arith.constant 0 : i32
    %c0_i32_1 = arith.constant 0 : i32
    return %c0_i32, %c0_i32_0 : i32, i32
  }
  func.func @transform_4(%arg0: i32) -> (i32, i32) {
    %c0_i32 = arith.constant 0 : i32
    %c0_i32_0 = arith.constant 0 : i32
    %c0_i32_1 = arith.constant 0 : i32
    return %c0_i32, %c0_i32_0 : i32, i32
  }
  func.func @transform_5(%arg0: i32) -> (i32, i32) {
    %c0_i32 = arith.constant 0 : i32
    %c0_i32_0 = arith.constant 0 : i32
    return %c0_i32, %arg0 : i32, i32
  }
}

</mosaic_0001>

<llo_original>
// kernel: mlp_predictor_forward.1
$region0: #{mlp_predictor_forward.1}
  #allocation0 [shape = 'u32[]', space=smem, size = 0x4, offset = 0x4, fixed_abs, tag = 'smem constant byte address 0x4 - core index']
  #allocation1 [shape = 'u32[72,128]{1,0:T(1,128)}', space=vmem, size = 0x9000, scoped, tag = 'internal scratch']
  %s0 = inlined_call_operand.vmem [shape: f32[16,128], index: 0, kind: input, shape index: {}]
  %s1 = inlined_call_operand.vmem [shape: bf16[32,128], index: 1, kind: input, shape index: {}]
  %s2 = inlined_call_operand.vmem [shape: f32[1,32], index: 2, kind: input, shape index: {}]
  %s3 = inlined_call_operand.vmem [shape: f32[2,32], index: 3, kind: input, shape index: {}]
  %s4 = inlined_call_operand.vmem [shape: f32[2,1], index: 4, kind: input, shape index: {}]
  %s5 = inlined_call_operand.vmem [shape: f32[2,16], index: 5, kind: output, shape index: {}]
  %s6 = sld [smem:[#allocation0]]
  $region30: #{mlp_predictor_forward.1} parent=0
    _
  %s8 = ssub.s32 1, %s6
  %s9 = scalar_select 0, %s8, %s6
  // Predicated region
  $region2: #{mlp_predictor_forward.1} parent=0 // pred_check
    _
  $region3: #{mlp_predictor_forward.1} parent=0 // pred_check_branch
    %11 = sbr.rel (0) target = $region5
  $region4: #{mlp_predictor_forward.1} parent=0 // pred_region
    _
  $region5: #{mlp_predictor_forward.1} parent=0 // pred_fallthru
    _
  // Predicated region
  $region6: #{mlp_predictor_forward.1} parent=0 // pred_check
    _
  $region7: #{mlp_predictor_forward.1} parent=0 // pred_check_branch
    %13 = sbr.rel (0) target = $region9
  $region8: #{mlp_predictor_forward.1} parent=0 // pred_region
    _
  $region9: #{mlp_predictor_forward.1} parent=0 // pred_fallthru
    _
  // Predicated region
  $region10: #{mlp_predictor_forward.1} parent=0 // pred_check
    _
  $region11: #{mlp_predictor_forward.1} parent=0 // pred_check_branch
    %15 = sbr.rel (0) target = $region13
  $region12: #{mlp_predictor_forward.1} parent=0 // pred_region
    _
  $region13: #{mlp_predictor_forward.1} parent=0 // pred_fallthru
    _
  // Predicated region
  $region14: #{mlp_predictor_forward.1} parent=0 // pred_check
    _
  $region15: #{mlp_predictor_forward.1} parent=0 // pred_check_branch
    %17 = sbr.rel (0) target = $region17
  $region16: #{mlp_predictor_forward.1} parent=0 // pred_region
    _
  $region17: #{mlp_predictor_forward.1} parent=0 // pred_fallthru
    _
  // Predicated region
  $region18: #{mlp_predictor_forward.1} parent=0 // pred_check
    _
  $region19: #{mlp_predictor_forward.1} parent=0 // pred_check_branch
    %19 = sbr.rel (0) target = $region21
  $region20: #{mlp_predictor_forward.1} parent=0 // pred_region
    _
  $region21: #{mlp_predictor_forward.1} parent=0 // pred_fallthru
    _
  %v21 = vld [vmem:[%s0] sm:$0xff]
  %v22 = vld [vmem:[%s0 + $0x8] sm:$0xff]
  %v23 = vpack.c.bf16 %v22, %v21
  %v24 = vld [vmem:[%s1] sm:$0xf]
  %v25 = vld [vmem:[%s1 + $0x4] sm:$0xf]
  %v26 = vld [vmem:[%s1 + $0x8] sm:$0xf]
  %v27 = vld [vmem:[%s1 + $0xc] sm:$0xf]
  %v28 = vld [vmem:[%s2] sm:$0x1]
  %v30 = vperm.slane %v28, 0
  %v36 = vunpack.c.l.b16 %v24
  %v37 = vunpack.c.l.b16 %v25
  %v38 = vunpack.c.l.b16 %v26
  %v39 = vunpack.c.l.b16 %v27
  %v40 = vpack.c.b16 %v37, %v36
  %v41 = vpack.c.b16 %v39, %v38
  %44 = vmatpush.bf16.xpose.msra.mxu0 0
  %45 = vmatpush.bf16.xpose.msra.mxu0 0
  %46 = vmatpush.bf16.xpose.msra.mxu0 0
  %47 = vmatpush.bf16.xpose.msra.mxu0 0
  %48 = vmatpush.bf16.xpose.msra.mxu0 0
  %49 = vmatpush.bf16.xpose.msra.mxu0 0
  %50 = vmatpush.bf16.xpose.msra.mxu0 %v41
  %51 = vmatpush.bf16.xpose.msra.mxu0 %v40
  %52 = vmatmul.bf16.gmra.mxu0 %v23
  %v53 = vpop.f32.mrf.mxu0
  %v54 = vadd.f32 %v30, %v53
  %v55 = vpop.f32.mrf.mxu0
  %v56 = vadd.f32 %v30, %v55
  %57 = vdwg.mxu0
  %v58 = vmax.f32 %v54, 0.0
  %v59 = vmax.f32 %v56, 0.0
  %v60 = vld [vmem:[%s3] sm:$0x3]
  %v61 = vld [vmem:[%s4] sm:$0x3]
  %63 = vset.pattern.permute.xlu0 0
  %64 = vperm.xlu0 %63, %v61
  %v65 = vpop.permute.xlu0 %64
  %vm67 = vcmask 261120
  %v69 = vsel %vm67, %v60, 0
  %v72 = vsel %vm67, %v58, 0
  %v75 = vsel %vm67, %v59, 0
  %77 = vmatpush.xpose.msra.mxu0 0.0
  %78 = vmatpush.xpose.msra.mxu0 0.0
  %79 = vmatpush.xpose.msra.mxu0 0.0
  %80 = vmatpush.xpose.msra.mxu0 0.0
  %81 = vmatpush.xpose.msra.mxu0 0.0
  %82 = vmatpush.xpose.msra.mxu0 0.0
  %83 = vmatpush.xpose.msra.mxu0 0.0
  %84 = vmatpush.xpose.msra.mxu0 0.0
  %85 = vmatpush.xpose.msra.mxu0 0.0
  %86 = vmatpush.xpose.msra.mxu0 0.0
  %87 = vmatpush.xpose.msra.mxu0 0.0
  %88 = vmatpush.xpose.msra.mxu0 0.0
  %89 = vmatpush.xpose.msra.mxu0 0.0
  %90 = vmatpush.xpose.msra.mxu0 0.0
  %91 = vmatpush.xpose.msra.mxu0 %v75
  %92 = vmatpush.xpose.msra.mxu0 %v72
  %93 = vmatmul.f32.gmra.mxu0 %v69
  %v94 = vpop.f32.mrf.mxu0
  %v95 = vadd.f32 %v65, %v94
  %96 = vdwg.mxu0
  %vm97 = vcmask 123904
  %98 = vst.msk [vmem:[%s5] sm:$0x3] %vm97, %v95
  // Predicated region
  $region22: #{mlp_predictor_forward.1} parent=0 // pred_check
    _
  $region23: #{mlp_predictor_forward.1} parent=0 // pred_check_branch
    %100 = sbr.rel (0) target = $region25
  $region24: #{mlp_predictor_forward.1} parent=0 // pred_region
    _
  $region25: #{mlp_predictor_forward.1} parent=0 // pred_fallthru
    _
  // Predicated region
  $region26: #{mlp_predictor_forward.1} parent=0 // pred_check
    _
  $region27: #{mlp_predictor_forward.1} parent=0 // pred_check_branch
    %102 = sbr.rel (0) target = $region29
  $region28: #{mlp_predictor_forward.1} parent=0 // pred_region
    _
  $region29: #{mlp_predictor_forward.1} parent=0 // pred_fallthru
    _

</llo_original>
